<compile_context>
chip_gen: v7x
topology: tpu7x:2x2x1
jax: 0.10.0
libtpu: 0.0.40
codegen_flags: <defaults>
</compile_context>

<pallas_src>
import functools

import jax
import jax.numpy as jnp
from jax.experimental import pallas as pl
from jax.experimental.pallas import tpu as pltpu


def _round_up(x, m):
    return ((x + m - 1) // m) * m


def _choose_tile(dim, pref, align):
    """Pad `dim` to `align`, then pick a tile (<= pref, multiple of `align`)
    minimizing extra padding; prefer the largest such tile on ties.
    Returns (tile, padded_dim)."""
    dim_p = _round_up(dim, align)
    pref = max(align, (pref // align) * align)
    if dim_p <= pref:
        return dim_p, dim_p
    best_key, best = None, None
    t = pref
    while t >= align:
        padded = _round_up(dim_p, t)
        key = (padded - dim_p, -t)
        if best_key is None or key < best_key:
            best_key, best = key, (t, padded)
        if padded == dim_p:  # exact divisor found (largest one <= pref)
            break
        t -= align
    return best


def _fc_kernel_single_k(x_ref, w_ref, b_ref, o_ref):
    # x_ref: (tm, Kp)  w_ref: (Kp, tn)  b_ref: (1, tn)  o_ref: (tm, tn)
    acc = jnp.dot(x_ref[...], w_ref[...], preferred_element_type=jnp.float32)
    o_ref[...] = jnp.tanh(acc + b_ref[...]).astype(o_ref.dtype)


def _fc_kernel_multi_k(x_ref, w_ref, b_ref, o_ref, acc_ref):
    # x_ref: (tm, tk)  w_ref: (tk, tn)  b_ref: (1, tn)
    # o_ref: (tm, tn)  acc_ref: (tm, tn) f32 scratch (persists across k steps)
    k = pl.program_id(2)

    @pl.when(k == 0)
    def _init():
        acc_ref[...] = jnp.zeros_like(acc_ref)

    acc_ref[...] += jnp.dot(
        x_ref[...], w_ref[...], preferred_element_type=jnp.float32
    )

    @pl.when(k == pl.num_programs(2) - 1)
    def _finalize():
        o_ref[...] = jnp.tanh(acc_ref[...] + b_ref[...]).astype(o_ref.dtype)


def make_fc_block(W, b, *, compute_dtype=jnp.bfloat16, out_dtype=jnp.float32,
                  tm=256, tn=256, tk=512):
    """Build a jitted FcBlock forward: x -> tanh(x @ W.T + b).

    W: (dim_out, dim_in), b: (dim_out,)  -- PyTorch nn.Linear layout.
    Weight transpose / pad / cast happen ONCE here; per call only x is
    padded and cast. compute_dtype is the MXU operand dtype (bf16 default,
    jnp.float32 for exactness, jnp.float8_e4m3fn opt-in on v7x); the
    accumulation and tanh epilogue are always float32.
    """
    W = jnp.asarray(W)
    b = jnp.asarray(b)
    dim_out, dim_in = W.shape
    assert b.shape == (dim_out,)

    compute_dtype = jnp.dtype(compute_dtype)
    out_dtype = jnp.dtype(out_dtype)
    # Sublane alignment for the x block in the compute dtype's packed layout.
    m_align = {4: 8, 2: 16, 1: 32}[compute_dtype.itemsize]

    # N / K tiles are fixed at prepare time (they define the padded weight).
    # 128-lane alignment; prefs of 256+ keep v6e/v7x's 256x256 MXU full.
    tk_, Kp = _choose_tile(dim_in, tk, 128)
    tn_, Np = _choose_tile(dim_out, tn, 128)
    grid_k = Kp // tk_

    # One-time (hoisted) weight/bias prep: transpose, zero-pad, cast.
    wp = jnp.pad(W.T.astype(jnp.float32), ((0, Kp - dim_in), (0, Np - dim_out)))
    wp = wp.astype(compute_dtype)
    bp = jnp.pad(b.astype(jnp.float32), (0, Np - dim_out)).reshape(1, Np)

    comp_b = compute_dtype.itemsize
    out_b = out_dtype.itemsize

    @jax.jit
    def apply(x):
        M, K = x.shape
        assert K == dim_in, f"expected dim_in={dim_in}, got {K}"

        tm_, Mp = _choose_tile(M, tm, m_align)
        gm, gn = Mp // tm_, Np // tn_
        # Expose >=2 blocks on a parallel axis when it costs no extra padding,
        # so both TensorCores on v7x get work (harmless on v5e/v6e).
        if gm * gn == 1 and Mp >= 2 * m_align and (Mp // 2) % m_align == 0:
            tm_ = Mp // 2
            gm = 2

        # Zero padding is exact for the matmul; padded rows/cols sliced off.
        xp = jnp.pad(x, ((0, Mp - M), (0, Kp - K))).astype(compute_dtype)

        # VMEM budget from the actual footprint (double-buffered in/out +
        # accumulator), capped at 48 MiB for v7x's 64 MiB physical VMEM.
        vmem_fp = (2 * (tm_ * tk_ + tk_ * tn_) * comp_b
                   + 2 * tn_ * 4
                   + 2 * tm_ * tn_ * out_b
                   + tm_ * tn_ * 4)
        vmem_limit = int(min(48 * 1024 * 1024, max(32 * 1024 * 1024, 2 * vmem_fp)))

        cost = pl.CostEstimate(
            flops=2 * Mp * Np * Kp,
            transcendentals=Mp * Np,
            bytes_accessed=(Mp * Kp + Kp * Np) * comp_b + Mp * Np * out_b + Np * 4,
        )

        if grid_k == 1:
            # Single K tile: no accumulator scratch, no acc read-modify-write.
            grid = (gm, gn)
            in_specs = [
                pl.BlockSpec((tm_, Kp), lambda i, j: (i, 0)),
                pl.BlockSpec((Kp, tn_), lambda i, j: (0, j)),
                pl.BlockSpec((1, tn_), lambda i, j: (0, j)),
            ]
            out_specs = pl.BlockSpec((tm_, tn_), lambda i, j: (i, j))
            scratch = []
            semantics = ("parallel", "parallel")
            kernel = _fc_kernel_single_k
        else:
            grid = (gm, gn, grid_k)
            in_specs = [
                pl.BlockSpec((tm_, tk_), lambda i, j, k: (i, k)),
                pl.BlockSpec((tk_, tn_), lambda i, j, k: (k, j)),
                pl.BlockSpec((1, tn_), lambda i, j, k: (0, j)),
            ]
            out_specs = pl.BlockSpec((tm_, tn_), lambda i, j, k: (i, j))
            scratch = [pltpu.VMEM((tm_, tn_), jnp.float32)]
            semantics = ("parallel", "parallel", "arbitrary")
            kernel = _fc_kernel_multi_k

        out = pl.pallas_call(
            kernel,
            out_shape=jax.ShapeDtypeStruct((Mp, Np), out_dtype),
            grid_spec=pltpu.PrefetchScalarGridSpec(
                num_scalar_prefetch=0,
                grid=grid,
                in_specs=in_specs,
                out_specs=out_specs,
                scratch_shapes=scratch,
            ),
            compiler_params=pltpu.CompilerParams(
                dimension_semantics=semantics,
                vmem_limit_bytes=vmem_limit,
            ),
            cost_estimate=cost,
        )(xp, wp, bp)

        return out[:M, :dim_out]

    return apply


if __name__ == "__main__":
    key = jax.random.PRNGKey(0)

    def make_params(k, batch, dim_in, dim_out):
        kx, kw, kb = jax.random.split(k, 3)
        bound = 1.0 / (dim_in ** 0.5)
        W = jax.random.uniform(kw, (dim_out, dim_in), jnp.float32, -bound, bound)
        b = jax.random.uniform(kb, (dim_out,), jnp.float32, -bound, bound)
        x = jax.random.normal(kx, (batch, dim_in), jnp.float32)
        return x, W, b

    def ref(x, W, b):
        return jnp.tanh(x @ W.T + b[None, :])

    k1, k2 = jax.random.split(key)

    # Case 1: the module's toy shapes (batch=8, dim_in=32, dim_out=32).
    x1, W1, b1 = make_params(k1, 8, 32, 32)
    fc1 = make_fc_block(W1, b1)  # default bf16 MXU operands, f32 acc + tanh
    y1 = jax.block_until_ready(fc1(x1))
    assert y1.shape == (8, 32)
    assert jnp.allclose(y1, ref(x1, W1, b1), atol=3e-2, rtol=3e-2), "case1 bf16 mismatch"

    fc1_f32 = make_fc_block(W1, b1, compute_dtype=jnp.float32)
    y1f = jax.block_until_ready(fc1_f32(x1))
    assert jnp.allclose(y1f, ref(x1, W1, b1), atol=1e-5, rtol=1e-5), "case1 f32 mismatch"

    # Case 2: K-tiling (grid_k=2), non-128-multiple dim_out, M split into two
    # parallel blocks (feeds both v7x TensorCores).
    x2, W2, b2 = make_params(k2, 64, 256, 192)
    fc2 = make_fc_block(W2, b2, tk=128)
    y2 = jax.block_until_ready(fc2(x2))
    assert y2.shape == (64, 192)
    assert jnp.allclose(y2, ref(x2, W2, b2), atol=3e-2, rtol=3e-2), "case2 bf16 mismatch"

    fc2_f32 = make_fc_block(W2, b2, tk=128, compute_dtype=jnp.float32)
    y2f = jax.block_until_ready(fc2_f32(x2))
    assert jnp.allclose(y2f, ref(x2, W2, b2), atol=1e-5, rtol=1e-5), "case2 f32 mismatch"

    print("KERNEL_OK")
</pallas_src>

<mosaic_0001>
module attributes {stable_mosaic.version = 11 : i64} {
  func.func @_fc_kernel_single_k(%arg0: i32, %arg1: i32, %arg2: memref<16x128xbf16, #tpu.memory_space<vmem>>, %arg3: memref<128x128xbf16, #tpu.memory_space<vmem>>, %arg4: memref<1x128xf32, #tpu.memory_space<vmem>>, %arg5: memref<16x128xf32, #tpu.memory_space<vmem>>) attributes {dimension_semantics = [#tpu.dimension_semantics<parallel>, #tpu.dimension_semantics<parallel>], iteration_bounds = array<i64: 1, 1>, scalar_prefetch = 0 : i64, scratch_operands = 0 : i64, tpu.core_type = #tpu.core_type<tc>, window_params = [{transform_indices = @transform_0, window_bounds = array<i64: 16, 128>}, {transform_indices = @transform_1, window_bounds = array<i64: 128, 128>}, {transform_indices = @transform_2, window_bounds = array<i64: 1, 128>}, {transform_indices = @transform_3, window_bounds = array<i64: 16, 128>}]} {
    %c0 = arith.constant 0 : index
    %c0_0 = arith.constant 0 : index
    %0 = vector.load %arg2[%c0, %c0_0] : memref<16x128xbf16, #tpu.memory_space<vmem>>, vector<16x128xbf16>
    %c0_1 = arith.constant 0 : index
    %c0_2 = arith.constant 0 : index
    %1 = vector.load %arg3[%c0_1, %c0_2] : memref<128x128xbf16, #tpu.memory_space<vmem>>, vector<128x128xbf16>
    %cst = arith.constant dense<0.000000e+00> : vector<16x128xf32>
    %2 = tpu.matmul %0, %1, %cst {dimension_numbers = #tpu.dot_dimension_numbers<[1], [0], [0], [1], [0, 0, 1, 1], [], []>} : vector<16x128xbf16>, vector<128x128xbf16>, vector<16x128xf32> -> vector<16x128xf32>
    %c0_3 = arith.constant 0 : index
    %c0_4 = arith.constant 0 : index
    %3 = vector.load %arg4[%c0_3, %c0_4] : memref<1x128xf32, #tpu.memory_space<vmem>>, vector<1x128xf32>
    %4 = vector.broadcast %3 : vector<1x128xf32> to vector<16x128xf32>
    %5 = arith.addf %2, %4 : vector<16x128xf32>
    %6 = math.tanh %5 : vector<16x128xf32>
    %c0_5 = arith.constant 0 : index
    %c0_6 = arith.constant 0 : index
    %7 = vector.load %arg5[%c0_5, %c0_6] : memref<16x128xf32, #tpu.memory_space<vmem>>, vector<16x128xf32>
    tpu.vector_store %arg5[%c0_5, %c0_6], %6 {strides = array<i32>} : memref<16x128xf32, #tpu.memory_space<vmem>>, vector<16x128xf32>,
    return
  }
  func.func @transform_0(%arg0: i32, %arg1: i32) -> (i32, i32) {
    %c0_i32 = arith.constant 0 : i32
    %c0_i32_0 = arith.constant 0 : i32
    return %arg0, %c0_i32 : i32, i32
  }
  func.func @transform_1(%arg0: i32, %arg1: i32) -> (i32, i32) {
    %c0_i32 = arith.constant 0 : i32
    %c0_i32_0 = arith.constant 0 : i32
    return %c0_i32, %arg1 : i32, i32
  }
  func.func @transform_2(%arg0: i32, %arg1: i32) -> (i32, i32) {
    %c0_i32 = arith.constant 0 : i32
    %c0_i32_0 = arith.constant 0 : i32
    return %c0_i32, %arg1 : i32, i32
  }
  func.func @transform_3(%arg0: i32, %arg1: i32) -> (i32, i32) {
    %c0_i32 = arith.constant 0 : i32
    return %arg0, %arg1 : i32, i32
  }
}

</mosaic_0001>

<llo_original>
// kernel: apply.1
$region0: #{apply.1}
  #allocation0 [shape = 'u32[]', space=smem, size = 0x4, offset = 0x4, fixed_abs, tag = 'smem constant byte address 0x4 - core index']
  #allocation1 [shape = 'u32[144,128]{1,0:T(1,128)}', space=vmem, size = 0x12000, scoped, tag = 'internal scratch']
  %s0 = inlined_call_operand.vmem [shape: bf16[16,128], index: 0, kind: input, shape index: {}]
  %s1 = inlined_call_operand.hbm [shape: bf16[128,128], index: 1, kind: input, shape index: {}]
  %s2 = inlined_call_operand.vmem [shape: f32[1,128], index: 2, kind: input, shape index: {}]
  %s3 = inlined_call_operand.vmem [shape: f32[16,128], index: 3, kind: output, shape index: {}]
  %s4 = sld [smem:[#allocation0]]
  $region26: #{apply.1} parent=0
    _
  %s6 = ssub.s32 1, %s4
  %s7 = scalar_select 0, %s6, %s4
  $region1: #{apply.1} parent=0
    #allocation2 [shape = 'u8[32768]{0}', space=vmem, size = 0x8000, scoped, tag = 'input window, operand 1, single buffered']
    #allocation3 [shape = 's32[1]{0}', space=sflag, size = 0x4, scoped, tag = 'scoped memory for apply.1']
    %8 = vsyncpa [#allocation3], 0
    // Predicated region
    $region2: #{apply.1} parent=1 // pred_check
      _
    $region3: #{apply.1} parent=1 // pred_check_branch
      %10 = sbr.rel (0) target = $region5
    $region4: #{apply.1} parent=1 // pred_region
      _
    $region5: #{apply.1} parent=1 // pred_fallthru
      _
    // Predicated region
    $region6: #{apply.1} parent=1 // pred_check
      _
    $region7: #{apply.1} parent=1 // pred_check_branch
      %12 = sbr.rel (0) target = $region9
    $region8: #{apply.1} parent=1 // pred_region
      %s14 = ssub.s32 1024, 1024
      %15 = vsyncadd [#allocation3], %s14
      %s16 = sshll.u32 [#allocation2], 4
      %s17 = int_to_ptr.vmem [resolvable:$true] %s16
      %22 = dma.hbm_to_vmem [thread:$0]  %s1, 1024, %s17, [#allocation3], 64, 64, 4
    $region9: #{apply.1} parent=1 // pred_fallthru
      _
    // Predicated region
    $region10: #{apply.1} parent=1 // pred_check
      _
    $region11: #{apply.1} parent=1 // pred_check_branch
      %24 = sbr.rel (0) target = $region13
    $region12: #{apply.1} parent=1 // pred_region
      _
    $region13: #{apply.1} parent=1 // pred_fallthru
      _
    // Predicated region
    $region14: #{apply.1} parent=1 // pred_check
      _
    $region15: #{apply.1} parent=1 // pred_check_branch
      %26 = sbr.rel (0) target = $region17
    $region16: #{apply.1} parent=1 // pred_region
      %27 = dma.done [#allocation3], 1024
    $region17: #{apply.1} parent=1 // pred_fallthru
      _
    %v29 = vld [vmem:[%s0] sm:$0xf]
    %v30 = vld [vmem:[%s0 + $0x4] sm:$0xf]
    %v31 = vld [vmem:[#allocation2] sm:$0xf]
    %v32 = vld [vmem:[#allocation2 + $0x4] sm:$0xf]
    %v33 = vld [vmem:[#allocation2 + $0x8] sm:$0xf]
    %v34 = vld [vmem:[#allocation2 + $0xc] sm:$0xf]
    %v35 = vld [vmem:[#allocation2 + $0x10] sm:$0xf]
    %v36 = vld [vmem:[#allocation2 + $0x14] sm:$0xf]
    %v37 = vld [vmem:[#allocation2 + $0x18] sm:$0xf]
    %v38 = vld [vmem:[#allocation2 + $0x1c] sm:$0xf]
    %v39 = vld [vmem:[#allocation2 + $0x20] sm:$0xf]
    %v40 = vld [vmem:[#allocation2 + $0x24] sm:$0xf]
    %v41 = vld [vmem:[#allocation2 + $0x28] sm:$0xf]
    %v42 = vld [vmem:[#allocation2 + $0x2c] sm:$0xf]
    %v43 = vld [vmem:[#allocation2 + $0x30] sm:$0xf]
    %v44 = vld [vmem:[#allocation2 + $0x34] sm:$0xf]
    %v45 = vld [vmem:[#allocation2 + $0x38] sm:$0xf]
    %v46 = vld [vmem:[#allocation2 + $0x3c] sm:$0xf]
    %v47 = vld [vmem:[%s2] sm:$0x1]
    %v49 = vlaneseq
    %v50 = vshrl.u32 %v49, 7
    %v51 = vsub.s32 0, %v50
    %v52 = vrot.slane %v47, %v51
    %v56 = vunpack.c.l.b16 %v29
    %v57 = vunpack.c.l.b16 %v30
    %v58 = vpack.c.b16 %v57, %v56
    %v76 = vunpack.c.l.b16 %v31
    %v77 = vunpack.c.l.b16 %v32
    %v78 = vunpack.c.l.b16 %v33
    %v79 = vunpack.c.l.b16 %v34
    %v80 = vunpack.c.l.b16 %v35
    %v81 = vunpack.c.l.b16 %v36
    %v82 = vunpack.c.l.b16 %v37
    %v83 = vunpack.c.l.b16 %v38
    %v84 = vunpack.c.l.b16 %v39
    %v85 = vunpack.c.l.b16 %v40
    %v86 = vunpack.c.l.b16 %v41
    %v87 = vunpack.c.l.b16 %v42
    %v88 = vunpack.c.l.b16 %v43
    %v89 = vunpack.c.l.b16 %v44
    %v90 = vunpack.c.l.b16 %v45
    %v91 = vunpack.c.l.b16 %v46
    %v92 = vpack.c.b16 %v77, %v76
    %v93 = vpack.c.b16 %v79, %v78
    %v94 = vpack.c.b16 %v81, %v80
    %v95 = vpack.c.b16 %v83, %v82
    %v96 = vpack.c.b16 %v85, %v84
    %v97 = vpack.c.b16 %v87, %v86
    %v98 = vpack.c.b16 %v89, %v88
    %v99 = vpack.c.b16 %v91, %v90
    %108 = vmatprep.subr.bf16.mxu0 0
    %109 = vmatpush1.bf16.msra.mxu0 %v92
    %110 = vmatprep.subr.bf16.mxu0 0
    %111 = vmatpush1.bf16.msra.mxu0 %v93
    %112 = vmatprep.subr.bf16.mxu0 0
    %113 = vmatpush1.bf16.msra.mxu0 %v94
    %114 = vmatprep.subr.bf16.mxu0 0
    %115 = vmatpush1.bf16.msra.mxu0 %v95
    %116 = vmatprep.subr.bf16.mxu0 0
    %117 = vmatpush1.bf16.msra.mxu0 %v96
    %118 = vmatprep.subr.bf16.mxu0 0
    %119 = vmatpush1.bf16.msra.mxu0 %v97
    %120 = vmatprep.subr.bf16.mxu0 0
    %121 = vmatpush1.bf16.msra.mxu0 %v98
    %122 = vmatprep.subr.bf16.mxu0 0
    %123 = vmatpush1.bf16.msra.mxu0 %v99
    %124 = vmatprep.subr.bf16.mxu0 0
    %125 = vmatpush1.bf16.msra.mxu0 0
    %126 = vmatprep.subr.bf16.mxu0 0
    %127 = vmatpush1.bf16.msra.mxu0 0
    %128 = vmatprep.subr.bf16.mxu0 0
    %129 = vmatpush1.bf16.msra.mxu0 0
    %130 = vmatprep.subr.bf16.mxu0 0
    %131 = vmatpush1.bf16.msra.mxu0 0
    %132 = vmatprep.subr.bf16.mxu0 0
    %133 = vmatpush1.bf16.msra.mxu0 0
    %134 = vmatprep.subr.bf16.mxu0 0
    %135 = vmatpush1.bf16.msra.mxu0 0
    %136 = vmatprep.subr.bf16.mxu0 0
    %137 = vmatpush1.bf16.msra.mxu0 0
    %138 = vmatprep.subr.bf16.mxu0 0
    %139 = vmatpush1.bf16.msra.mxu0 0
    %140 = vmatprep.mubr.bf16.mxu0 0
    %141 = vmatmul.mubr.bf16.gmra.mrb[0].mxu0 %v58
    %v142 = vpop.f32.mrb[0].mxu0
    %v143 = vadd.f32 %v52, %v142
    %v144 = vpop.f32.mrb[0].mxu0
    %v145 = vpop.f32.mrb[0].mxu0
    %v146 = vadd.f32 %v52, %v145
    %v147 = vpop.f32.mrb[0].mxu0
    %148 = vdwg.mxu0
    %v149 = vtanh.pop %v143
    %v150 = vtanh.pop %v146
    %151 = vst [vmem:[%s3] sm:$0xff] %v149
    %152 = vst [vmem:[%s3 + $0x8] sm:$0xff] %v150
    // Predicated region
    $region18: #{apply.1} parent=1 // pred_check
      _
    $region19: #{apply.1} parent=1 // pred_check_branch
      %154 = sbr.rel (0) target = $region21
    $region20: #{apply.1} parent=1 // pred_region
      _
    $region21: #{apply.1} parent=1 // pred_fallthru
      _
    // Predicated region
    $region22: #{apply.1} parent=1 // pred_check
      _
    $region23: #{apply.1} parent=1 // pred_check_branch
      %156 = sbr.rel (0) target = $region25
    $region24: #{apply.1} parent=1 // pred_region
      _
    $region25: #{apply.1} parent=1 // pred_fallthru
      _
    %157 = vsyncpa [#allocation3], 1

</llo_original>
